<compile_context>
chip_gen: v7x
topology: tpu7x:2x2x1
jax: 0.10.0
libtpu: 0.0.40
codegen_flags: <defaults>
</compile_context>

<pallas_src>
import jax
import jax.numpy as jnp
from jax.experimental import pallas as pl
from jax.experimental.pallas import tpu as pltpu


# real and lane-padded feature sizes per layer boundary (layer 6 handled specially)
_DIMS = [6, 64, 128, 256, 128, 64, 1]
_PAD_DIMS = [8, 128, 128, 256, 128, 128]   # padded inputs of layers 1..6

_BT_CAP = 2048            # max rows per grid step (VMEM is nowhere near binding)
_SPLIT_THRESHOLD = 1024   # batches >= this get an even grid >= 2 (v7x: 2 TensorCores)
_ROW_ALIGN = 16           # bf16 sublane packing: keep batch tiles 16-row aligned


def _pick_act_dtype():
    """bf16 bias-add/ReLU epilogue on bf16-VALU generations (v6e/v7x); f32 on older."""
    try:
        kind = jax.devices()[0].device_kind.lower()
    except Exception:
        return jnp.float32
    if any(v in kind for v in ("v2", "v3", "v4", "v5")):
        return jnp.float32
    return jnp.bfloat16


_ACT_DTYPE = _pick_act_dtype()


# ----------------------------- Pallas kernel ---------------------------------
def _mlp_kernel(x_ref,
                w1_ref, b1_ref,
                w2_ref, b2_ref,
                w3_ref, b3_ref,
                w4_ref, b4_ref,
                w5_ref, b5_ref,
                w6_ref, b6_ref,
                o_ref):
    h = x_ref[...]  # (Bt, 8) bf16

    def dense_relu(h, w_ref, b_ref):
        # bf16 MXU matmul with f32 accumulation; bias + ReLU epilogue in _ACT_DTYPE
        # (bf16 on v6e/v7x -> no per-layer repack; f32 on v5e which lacks bf16 VALU).
        y = jnp.dot(h.astype(jnp.bfloat16), w_ref[...],
                    preferred_element_type=jnp.float32)
        y = y.astype(_ACT_DTYPE) + b_ref[...]   # (1, out) broadcasts over rows
        return jnp.maximum(y, 0.0)              # ReLU, stays in _ACT_DTYPE

    h = dense_relu(h, w1_ref, b1_ref)   # (Bt, 128)
    h = dense_relu(h, w2_ref, b2_ref)   # (Bt, 128)
    h = dense_relu(h, w3_ref, b3_ref)   # (Bt, 256)
    h = dense_relu(h, w4_ref, b4_ref)   # (Bt, 128)
    h = dense_relu(h, w5_ref, b5_ref)   # (Bt, 128)

    # Layer 6 (64 -> 1): keep the degenerate projection off the MXU.
    # w6 is packed as one (1, 128) f32 lane row (real weights in lanes 0..63);
    # VPU multiply + XLU lane-reduce replaces a padded 128->8 matmul and the
    # output is written as a single lane.
    y = jnp.sum(h.astype(jnp.float32) * w6_ref[...], axis=-1, keepdims=True)
    y = y + b6_ref[...]                  # (Bt, 1) + (1, 1)
    o_ref[...] = jnp.maximum(y, 0.0)     # spec ends with ReLU


# ----------------------------- params ----------------------------------------
def make_params(key):
    """Deterministic PyTorch-Linear-style init (uniform(-1/sqrt(fan_in), +)), f32."""
    params = []
    for i in range(6):
        fan_in, fan_out = _DIMS[i], _DIMS[i + 1]
        key, kw, kb = jax.random.split(key, 3)
        bound = 1.0 / jnp.sqrt(jnp.float32(fan_in))
        w = jax.random.uniform(kw, (fan_in, fan_out), jnp.float32, -bound, bound)
        b = jax.random.uniform(kb, (fan_out,), jnp.float32, -bound, bound)
        params.append((w, b))
    return params


def prepare_params(params):
    """Pad + cast ONCE at model-load time (kept out of the per-call jitted path).

    Layers 1..5: weights -> bf16, zero-padded to (_PAD_DIMS[i], _PAD_DIMS[i+1]);
                 biases  -> _ACT_DTYPE, zero-padded to (1, _PAD_DIMS[i+1]).
    Layer 6:     weight column packed as a (1, 128) f32 lane row; bias -> (1, 1) f32.
    Returns a flat tuple (w1, b1, ..., w5, b5, w6_row, b6).
    """
    flat = []
    for i in range(5):
        w, b = params[i]
        pin, pout = _PAD_DIMS[i], _PAD_DIMS[i + 1]
        wp = jnp.zeros((pin, pout), jnp.bfloat16)
        wp = wp.at[: w.shape[0], : w.shape[1]].set(w.astype(jnp.bfloat16))
        bp = jnp.zeros((1, pout), _ACT_DTYPE)
        bp = bp.at[0, : b.shape[0]].set(b.astype(_ACT_DTYPE))
        flat += [wp, bp]
    w6, b6 = params[5]                                   # (64, 1), (1,)
    w6_row = jnp.zeros((1, 128), jnp.float32)
    w6_row = w6_row.at[0, : w6.shape[0]].set(w6[:, 0].astype(jnp.float32))
    b6p = b6.astype(jnp.float32).reshape(1, 1)
    flat += [w6_row, b6p]
    return tuple(flat)


# ----------------------------- wrapper ----------------------------------------
def _round_up(x, m):
    return ((x + m - 1) // m) * m


def _choose_tiling(batch):
    """Static tiling from the traced batch size: (Bt, n_steps, B_pad)."""
    b_aligned = _round_up(batch, _ROW_ALIGN)
    n_steps = max(1, -(-b_aligned // _BT_CAP))
    if b_aligned >= _SPLIT_THRESHOLD:
        # guarantee an even grid of >= 2 "parallel" steps so both v7x TCs get work
        n_steps = _round_up(max(2, n_steps), 2)
    bt = _round_up(-(-b_aligned // n_steps), _ROW_ALIGN)
    return bt, n_steps, n_steps * bt


@jax.jit
def action_conditioned_ff(x, flat_params):
    """x: (B, 6) float32, flat_params: output of prepare_params -> (B, 1) float32."""
    B = x.shape[0]
    Bt, n_steps, B_pad = _choose_tiling(B)
    # pad batch rows to the tile multiple, features 6 -> 8 lanes, cast to bf16
    # (halves the only per-step input DMA; first-layer astype becomes a no-op)
    x_pad = jnp.pad(x, ((0, B_pad - B), (0, _PAD_DIMS[0] - x.shape[1])))
    x_pad = x_pad.astype(jnp.bfloat16)

    in_specs = [pl.BlockSpec((Bt, _PAD_DIMS[0]), lambda i: (i, 0))]
    for p in flat_params:
        # grid-invariant weight/bias blocks (full arrays, index (0,0) every step)
        in_specs.append(pl.BlockSpec(p.shape, lambda i: (0, 0)))

    out = pl.pallas_call(
        _mlp_kernel,
        out_shape=jax.ShapeDtypeStruct((B_pad, 1), jnp.float32),
        grid_spec=pltpu.PrefetchScalarGridSpec(
            num_scalar_prefetch=0,
            grid=(n_steps,),
            in_specs=in_specs,
            out_specs=pl.BlockSpec((Bt, 1), lambda i: (i, 0)),
        ),
        compiler_params=pltpu.CompilerParams(
            dimension_semantics=("parallel",),
            # peak use is ~1-2 MiB; set explicitly so larger Bt never trips
            # v5e's 16 MiB scoped-VMEM default
            vmem_limit_bytes=32 * 1024 * 1024),
    )(x_pad, *flat_params)

    return out[:B, :]


# ----------------------------- reference -------------------------------------
def reference_forward(x, params):
    """Pure-JAX f32 reference matching the PyTorch forward (eval mode)."""
    h = x
    for w, b in params:
        h = jnp.maximum(h @ w + b, 0.0)
    return h


if __name__ == "__main__":
    key = jax.random.PRNGKey(0)
    kparams, kx1, kx2 = jax.random.split(key, 3)

    params = make_params(kparams)
    flat_params = prepare_params(params)   # pad + cast once, outside jit

    # primary small-shape check: batch=2, 6 input features (pads to one 16-row tile)
    x = jax.random.normal(kx1, (2, 6), jnp.float32)
    out = jax.block_until_ready(action_conditioned_ff(x, flat_params))
    ref = reference_forward(x, params)
    assert out.shape == (2, 1), out.shape
    assert jnp.allclose(out, ref, atol=2e-2, rtol=5e-2), (out, ref)

    # secondary check exercising the multi-step parallel grid (Bt=600, grid=2)
    x2 = jax.random.normal(kx2, (1200, 6), jnp.float32)
    out2 = jax.block_until_ready(action_conditioned_ff(x2, flat_params))
    ref2 = reference_forward(x2, params)
    assert out2.shape == (1200, 1), out2.shape
    assert jnp.allclose(out2, ref2, atol=2e-2, rtol=5e-2)

    print("KERNEL_OK")
</pallas_src>

<mosaic_0001>
module attributes {stable_mosaic.version = 11 : i64} {
  func.func @_mlp_kernel(%arg0: i32, %arg1: memref<16x8xbf16, #tpu.memory_space<vmem>>, %arg2: memref<8x128xbf16, #tpu.memory_space<vmem>>, %arg3: memref<1x128xbf16, #tpu.memory_space<vmem>>, %arg4: memref<128x128xbf16, #tpu.memory_space<vmem>>, %arg5: memref<1x128xbf16, #tpu.memory_space<vmem>>, %arg6: memref<128x256xbf16, #tpu.memory_space<vmem>>, %arg7: memref<1x256xbf16, #tpu.memory_space<vmem>>, %arg8: memref<256x128xbf16, #tpu.memory_space<vmem>>, %arg9: memref<1x128xbf16, #tpu.memory_space<vmem>>, %arg10: memref<128x128xbf16, #tpu.memory_space<vmem>>, %arg11: memref<1x128xbf16, #tpu.memory_space<vmem>>, %arg12: memref<1x128xf32, #tpu.memory_space<vmem>>, %arg13: memref<1x1xf32, #tpu.memory_space<vmem>>, %arg14: memref<16x1xf32, #tpu.memory_space<vmem>>) attributes {dimension_semantics = [#tpu.dimension_semantics<parallel>], iteration_bounds = array<i64: 1>, scalar_prefetch = 0 : i64, scratch_operands = 0 : i64, tpu.core_type = #tpu.core_type<tc>, window_params = [{transform_indices = @transform_0, window_bounds = array<i64: 16, 8>}, {pipeline_mode = #tpu.pipeline_mode<synchronous>, transform_indices = @transform_1, window_bounds = array<i64: 8, 128>}, {pipeline_mode = #tpu.pipeline_mode<synchronous>, transform_indices = @transform_2, window_bounds = array<i64: 1, 128>}, {pipeline_mode = #tpu.pipeline_mode<synchronous>, transform_indices = @transform_3, window_bounds = array<i64: 128, 128>}, {pipeline_mode = #tpu.pipeline_mode<synchronous>, transform_indices = @transform_4, window_bounds = array<i64: 1, 128>}, {pipeline_mode = #tpu.pipeline_mode<synchronous>, transform_indices = @transform_5, window_bounds = array<i64: 128, 256>}, {pipeline_mode = #tpu.pipeline_mode<synchronous>, transform_indices = @transform_6, window_bounds = array<i64: 1, 256>}, {pipeline_mode = #tpu.pipeline_mode<synchronous>, transform_indices = @transform_7, window_bounds = array<i64: 256, 128>}, {pipeline_mode = #tpu.pipeline_mode<synchronous>, transform_indices = @transform_8, window_bounds = array<i64: 1, 128>}, {pipeline_mode = #tpu.pipeline_mode<synchronous>, transform_indices = @transform_9, window_bounds = array<i64: 128, 128>}, {pipeline_mode = #tpu.pipeline_mode<synchronous>, transform_indices = @transform_10, window_bounds = array<i64: 1, 128>}, {pipeline_mode = #tpu.pipeline_mode<synchronous>, transform_indices = @transform_11, window_bounds = array<i64: 1, 128>}, {pipeline_mode = #tpu.pipeline_mode<synchronous>, transform_indices = @transform_12, window_bounds = array<i64: 1, 1>}, {transform_indices = @transform_13, window_bounds = array<i64: 16, 1>}]} {
    %c0 = arith.constant 0 : index
    %c0_0 = arith.constant 0 : index
    %0 = vector.load %arg1[%c0, %c0_0] : memref<16x8xbf16, #tpu.memory_space<vmem>>, vector<16x8xbf16>
    %c0_1 = arith.constant 0 : index
    %c0_2 = arith.constant 0 : index
    %1 = vector.load %arg2[%c0_1, %c0_2] : memref<8x128xbf16, #tpu.memory_space<vmem>>, vector<8x128xbf16>
    %cst = arith.constant dense<0.000000e+00> : vector<16x128xf32>
    %2 = tpu.matmul %0, %1, %cst {dimension_numbers = #tpu.dot_dimension_numbers<[1], [0], [0], [1], [0, 0, 1, 1], [], []>} : vector<16x8xbf16>, vector<8x128xbf16>, vector<16x128xf32> -> vector<16x128xf32>
    %3 = arith.truncf %2 : vector<16x128xf32> to vector<16x128xbf16>
    %c0_3 = arith.constant 0 : index
    %c0_4 = arith.constant 0 : index
    %4 = vector.load %arg3[%c0_3, %c0_4] : memref<1x128xbf16, #tpu.memory_space<vmem>>, vector<1x128xbf16>
    %5 = vector.broadcast %4 : vector<1x128xbf16> to vector<16x128xbf16>
    %6 = arith.addf %3, %5 : vector<16x128xbf16>
    %cst_5 = arith.constant 0.000000e+00 : bf16
    %7 = vector.broadcast %cst_5 : bf16 to vector<16x128xbf16>
    %8 = arith.maximumf %6, %7 : vector<16x128xbf16>
    %c0_6 = arith.constant 0 : index
    %c0_7 = arith.constant 0 : index
    %9 = vector.load %arg4[%c0_6, %c0_7] : memref<128x128xbf16, #tpu.memory_space<vmem>>, vector<128x128xbf16>
    %cst_8 = arith.constant dense<0.000000e+00> : vector<16x128xf32>
    %10 = tpu.matmul %8, %9, %cst_8 {dimension_numbers = #tpu.dot_dimension_numbers<[1], [0], [0], [1], [0, 0, 1, 1], [], []>} : vector<16x128xbf16>, vector<128x128xbf16>, vector<16x128xf32> -> vector<16x128xf32>
    %11 = arith.truncf %10 : vector<16x128xf32> to vector<16x128xbf16>
    %c0_9 = arith.constant 0 : index
    %c0_10 = arith.constant 0 : index
    %12 = vector.load %arg5[%c0_9, %c0_10] : memref<1x128xbf16, #tpu.memory_space<vmem>>, vector<1x128xbf16>
    %13 = vector.broadcast %12 : vector<1x128xbf16> to vector<16x128xbf16>
    %14 = arith.addf %11, %13 : vector<16x128xbf16>
    %cst_11 = arith.constant 0.000000e+00 : bf16
    %15 = vector.broadcast %cst_11 : bf16 to vector<16x128xbf16>
    %16 = arith.maximumf %14, %15 : vector<16x128xbf16>
    %c0_12 = arith.constant 0 : index
    %c0_13 = arith.constant 0 : index
    %17 = vector.load %arg6[%c0_12, %c0_13] : memref<128x256xbf16, #tpu.memory_space<vmem>>, vector<128x256xbf16>
    %cst_14 = arith.constant dense<0.000000e+00> : vector<16x256xf32>
    %18 = tpu.matmul %16, %17, %cst_14 {dimension_numbers = #tpu.dot_dimension_numbers<[1], [0], [0], [1], [0, 0, 1, 1], [], []>} : vector<16x128xbf16>, vector<128x256xbf16>, vector<16x256xf32> -> vector<16x256xf32>
    %19 = arith.truncf %18 : vector<16x256xf32> to vector<16x256xbf16>
    %c0_15 = arith.constant 0 : index
    %c0_16 = arith.constant 0 : index
    %20 = vector.load %arg7[%c0_15, %c0_16] : memref<1x256xbf16, #tpu.memory_space<vmem>>, vector<1x256xbf16>
    %21 = vector.broadcast %20 : vector<1x256xbf16> to vector<16x256xbf16>
    %22 = arith.addf %19, %21 : vector<16x256xbf16>
    %cst_17 = arith.constant 0.000000e+00 : bf16
    %23 = vector.broadcast %cst_17 : bf16 to vector<16x256xbf16>
    %24 = arith.maximumf %22, %23 : vector<16x256xbf16>
    %c0_18 = arith.constant 0 : index
    %c0_19 = arith.constant 0 : index
    %25 = vector.load %arg8[%c0_18, %c0_19] : memref<256x128xbf16, #tpu.memory_space<vmem>>, vector<256x128xbf16>
    %cst_20 = arith.constant dense<0.000000e+00> : vector<16x128xf32>
    %26 = tpu.matmul %24, %25, %cst_20 {dimension_numbers = #tpu.dot_dimension_numbers<[1], [0], [0], [1], [0, 0, 1, 1], [], []>} : vector<16x256xbf16>, vector<256x128xbf16>, vector<16x128xf32> -> vector<16x128xf32>
    %27 = arith.truncf %26 : vector<16x128xf32> to vector<16x128xbf16>
    %c0_21 = arith.constant 0 : index
    %c0_22 = arith.constant 0 : index
    %28 = vector.load %arg9[%c0_21, %c0_22] : memref<1x128xbf16, #tpu.memory_space<vmem>>, vector<1x128xbf16>
    %29 = vector.broadcast %28 : vector<1x128xbf16> to vector<16x128xbf16>
    %30 = arith.addf %27, %29 : vector<16x128xbf16>
    %cst_23 = arith.constant 0.000000e+00 : bf16
    %31 = vector.broadcast %cst_23 : bf16 to vector<16x128xbf16>
    %32 = arith.maximumf %30, %31 : vector<16x128xbf16>
    %c0_24 = arith.constant 0 : index
    %c0_25 = arith.constant 0 : index
    %33 = vector.load %arg10[%c0_24, %c0_25] : memref<128x128xbf16, #tpu.memory_space<vmem>>, vector<128x128xbf16>
    %cst_26 = arith.constant dense<0.000000e+00> : vector<16x128xf32>
    %34 = tpu.matmul %32, %33, %cst_26 {dimension_numbers = #tpu.dot_dimension_numbers<[1], [0], [0], [1], [0, 0, 1, 1], [], []>} : vector<16x128xbf16>, vector<128x128xbf16>, vector<16x128xf32> -> vector<16x128xf32>
    %35 = arith.truncf %34 : vector<16x128xf32> to vector<16x128xbf16>
    %c0_27 = arith.constant 0 : index
    %c0_28 = arith.constant 0 : index
    %36 = vector.load %arg11[%c0_27, %c0_28] : memref<1x128xbf16, #tpu.memory_space<vmem>>, vector<1x128xbf16>
    %37 = vector.broadcast %36 : vector<1x128xbf16> to vector<16x128xbf16>
    %38 = arith.addf %35, %37 : vector<16x128xbf16>
    %cst_29 = arith.constant 0.000000e+00 : bf16
    %39 = vector.broadcast %cst_29 : bf16 to vector<16x128xbf16>
    %40 = arith.maximumf %38, %39 : vector<16x128xbf16>
    %41 = arith.extf %40 : vector<16x128xbf16> to vector<16x128xf32>
    %c0_30 = arith.constant 0 : index
    %c0_31 = arith.constant 0 : index
    %42 = vector.load %arg12[%c0_30, %c0_31] : memref<1x128xf32, #tpu.memory_space<vmem>>, vector<1x128xf32>
    %43 = vector.broadcast %42 : vector<1x128xf32> to vector<16x128xf32>
    %44 = arith.mulf %41, %43 : vector<16x128xf32>
    %cst_32 = arith.constant dense<0.000000e+00> : vector<16xf32>
    %45 = vector.multi_reduction <add>, %44, %cst_32 [1] : vector<16x128xf32> to vector<16xf32>
    %46 = vector.shape_cast %45 : vector<16xf32> to vector<16x1xf32>
    %c0_33 = arith.constant 0 : index
    %c0_34 = arith.constant 0 : index
    %47 = vector.load %arg13[%c0_33, %c0_34] : memref<1x1xf32, #tpu.memory_space<vmem>>, vector<1x1xf32>
    %48 = vector.broadcast %47 : vector<1x1xf32> to vector<16x1xf32>
    %49 = arith.addf %46, %48 : vector<16x1xf32>
    %cst_35 = arith.constant 0.000000e+00 : f32
    %50 = vector.broadcast %cst_35 : f32 to vector<16x1xf32>
    %51 = arith.maximumf %49, %50 : vector<16x1xf32>
    %c0_36 = arith.constant 0 : index
    %c0_37 = arith.constant 0 : index
    %52 = vector.load %arg14[%c0_36, %c0_37] : memref<16x1xf32, #tpu.memory_space<vmem>>, vector<16x1xf32>
    tpu.vector_store %arg14[%c0_36, %c0_37], %51 {strides = array<i32>} : memref<16x1xf32, #tpu.memory_space<vmem>>, vector<16x1xf32>,
    return
  }
  func.func @transform_0(%arg0: i32) -> (i32, i32) {
    %c0_i32 = arith.constant 0 : i32
    %c0_i32_0 = arith.constant 0 : i32
    return %arg0, %c0_i32 : i32, i32
  }
  func.func @transform_1(%arg0: i32) -> (i32, i32) {
    %c0_i32 = arith.constant 0 : i32
    %c0_i32_0 = arith.constant 0 : i32
    %c0_i32_1 = arith.constant 0 : i32
    return %c0_i32, %c0_i32_0 : i32, i32
  }
  func.func @transform_2(%arg0: i32) -> (i32, i32) {
    %c0_i32 = arith.constant 0 : i32
    %c0_i32_0 = arith.constant 0 : i32
    %c0_i32_1 = arith.constant 0 : i32
    return %c0_i32, %c0_i32_0 : i32, i32
  }
  func.func @transform_3(%arg0: i32) -> (i32, i32) {
    %c0_i32 = arith.constant 0 : i32
    %c0_i32_0 = arith.constant 0 : i32
    %c0_i32_1 = arith.constant 0 : i32
    return %c0_i32, %c0_i32_0 : i32, i32
  }
  func.func @transform_4(%arg0: i32) -> (i32, i32) {
    %c0_i32 = arith.constant 0 : i32
    %c0_i32_0 = arith.constant 0 : i32
    %c0_i32_1 = arith.constant 0 : i32
    return %c0_i32, %c0_i32_0 : i32, i32
  }
  func.func @transform_5(%arg0: i32) -> (i32, i32) {
    %c0_i32 = arith.constant 0 : i32
    %c0_i32_0 = arith.constant 0 : i32
    %c0_i32_1 = arith.constant 0 : i32
    return %c0_i32, %c0_i32_0 : i32, i32
  }
  func.func @transform_6(%arg0: i32) -> (i32, i32) {
    %c0_i32 = arith.constant 0 : i32
    %c0_i32_0 = arith.constant 0 : i32
    %c0_i32_1 = arith.constant 0 : i32
    return %c0_i32, %c0_i32_0 : i32, i32
  }
  func.func @transform_7(%arg0: i32) -> (i32, i32) {
    %c0_i32 = arith.constant 0 : i32
    %c0_i32_0 = arith.constant 0 : i32
    %c0_i32_1 = arith.constant 0 : i32
    return %c0_i32, %c0_i32_0 : i32, i32
  }
  func.func @transform_8(%arg0: i32) -> (i32, i32) {
    %c0_i32 = arith.constant 0 : i32
    %c0_i32_0 = arith.constant 0 : i32
    %c0_i32_1 = arith.constant 0 : i32
    return %c0_i32, %c0_i32_0 : i32, i32
  }
  func.func @transform_9(%arg0: i32) -> (i32, i32) {
    %c0_i32 = arith.constant 0 : i32
    %c0_i32_0 = arith.constant 0 : i32
    %c0_i32_1 = arith.constant 0 : i32
    return %c0_i32, %c0_i32_0 : i32, i32
  }
  func.func @transform_10(%arg0: i32) -> (i32, i32) {
    %c0_i32 = arith.constant 0 : i32
    %c0_i32_0 = arith.constant 0 : i32
    %c0_i32_1 = arith.constant 0 : i32
    return %c0_i32, %c0_i32_0 : i32, i32
  }
  func.func @transform_11(%arg0: i32) -> (i32, i32) {
    %c0_i32 = arith.constant 0 : i32
    %c0_i32_0 = arith.constant 0 : i32
    %c0_i32_1 = arith.constant 0 : i32
    return %c0_i32, %c0_i32_0 : i32, i32
  }
  func.func @transform_12(%arg0: i32) -> (i32, i32) {
    %c0_i32 = arith.constant 0 : i32
    %c0_i32_0 = arith.constant 0 : i32
    %c0_i32_1 = arith.constant 0 : i32
    return %c0_i32, %c0_i32_0 : i32, i32
  }
  func.func @transform_13(%arg0: i32) -> (i32, i32) {
    %c0_i32 = arith.constant 0 : i32
    %c0_i32_0 = arith.constant 0 : i32
    return %arg0, %c0_i32 : i32, i32
  }
}

</mosaic_0001>

<llo_original>
// kernel: action_conditioned_ff.1
$region0: #{action_conditioned_ff.1}
  #allocation0 [shape = 'u32[]', space=smem, size = 0x4, offset = 0x4, fixed_abs, tag = 'smem constant byte address 0x4 - core index']
  #allocation1 [shape = 'u32[144,128]{1,0:T(1,128)}', space=vmem, size = 0x12000, scoped, tag = 'internal scratch']
  #allocation2 [shape = 'f32[1,1]{1,0:T(1,128)S(1)}', space=vmem, size = 0x200, scoped, tag = 'scoped memory for action_conditioned_ff.1']
  %s0 = inlined_call_operand.vmem [shape: bf16[16,8], index: 0, kind: input, shape index: {}]
  %s1 = inlined_call_operand.vmem [shape: bf16[8,128], index: 1, kind: input, shape index: {}]
  %s2 = inlined_call_operand.vmem [shape: bf16[1,128], index: 2, kind: input, shape index: {}]
  %s3 = inlined_call_operand.hbm [shape: bf16[128,128], index: 3, kind: input, shape index: {}]
  %s4 = inlined_call_operand.vmem [shape: bf16[1,128], index: 4, kind: input, shape index: {}]
  %s5 = inlined_call_operand.hbm [shape: bf16[128,256], index: 5, kind: input, shape index: {}]
  %s6 = inlined_call_operand.vmem [shape: bf16[1,256], index: 6, kind: input, shape index: {}]
  %s7 = inlined_call_operand.hbm [shape: bf16[256,128], index: 7, kind: input, shape index: {}]
  %s8 = inlined_call_operand.vmem [shape: bf16[1,128], index: 8, kind: input, shape index: {}]
  %s9 = inlined_call_operand.hbm [shape: bf16[128,128], index: 9, kind: input, shape index: {}]
  %s10 = inlined_call_operand.vmem [shape: bf16[1,128], index: 10, kind: input, shape index: {}]
  %s11 = inlined_call_operand.vmem [shape: f32[1,128], index: 11, kind: input, shape index: {}]
  %s12 = inlined_call_operand.<no memory space> [shape: f32[1,1], index: 12, kind: input, shape index: {}]
  %s13 = inlined_call_operand.vmem [shape: f32[16,1], index: 13, kind: output, shape index: {}]
  %s14 = sld [smem:[#allocation0]]
  $region78: #{action_conditioned_ff.1} parent=0
    _
  %s16 = ssub.s32 1, %s14
  %s17 = scalar_select 0, %s16, %s14
  %v18 = vstv %s12
  %19 = vst [vmem:[#allocation2] sm:$0x1] %v18
  $region1: #{action_conditioned_ff.1} parent=0
    #allocation3 [shape = 'u8[32768]{0}', space=vmem, size = 0x8000, scoped, tag = 'input window, operand 3, single buffered']
    #allocation4 [shape = 's32[1]{0}', space=sflag, size = 0x4, scoped, tag = 'scoped memory for action_conditioned_ff.1']
    #allocation5 [shape = 'u8[65536]{0}', space=vmem, size = 0x10000, scoped, tag = 'input window, operand 5, single buffered']
    #allocation6 [shape = 's32[1]{0}', space=sflag, size = 0x4, scoped, tag = 'scoped memory for action_conditioned_ff.1']
    #allocation7 [shape = 'u8[65536]{0}', space=vmem, size = 0x10000, scoped, tag = 'input window, operand 7, single buffered']
    #allocation8 [shape = 'u8[32768]{0}', space=vmem, size = 0x8000, scoped, tag = 'input window, operand 9, single buffered']
    #allocation9 [shape = 's32[1]{0}', space=sflag, size = 0x4, scoped, tag = 'scoped memory for action_conditioned_ff.1']
    %20 = vsyncpa [#allocation4], 0
    %21 = vsyncpa [#allocation6], 0
    %22 = vsyncpa [#allocation9], 0
    // Predicated region
    $region2: #{action_conditioned_ff.1} parent=1 // pred_check
      _
    $region3: #{action_conditioned_ff.1} parent=1 // pred_check_branch
      %24 = sbr.rel (0) target = $region5
    $region4: #{action_conditioned_ff.1} parent=1 // pred_region
      _
    $region5: #{action_conditioned_ff.1} parent=1 // pred_fallthru
      _
    // Predicated region
    $region6: #{action_conditioned_ff.1} parent=1 // pred_check
      _
    $region7: #{action_conditioned_ff.1} parent=1 // pred_check_branch
      %26 = sbr.rel (0) target = $region9
    $region8: #{action_conditioned_ff.1} parent=1 // pred_region
      _
    $region9: #{action_conditioned_ff.1} parent=1 // pred_fallthru
      _
    // Predicated region
    $region10: #{action_conditioned_ff.1} parent=1 // pred_check
      _
    $region11: #{action_conditioned_ff.1} parent=1 // pred_check_branch
      %28 = sbr.rel (0) target = $region13
    $region12: #{action_conditioned_ff.1} parent=1 // pred_region
      _
    $region13: #{action_conditioned_ff.1} parent=1 // pred_fallthru
      _
    // Predicated region
    $region14: #{action_conditioned_ff.1} parent=1 // pred_check
      _
    $region15: #{action_conditioned_ff.1} parent=1 // pred_check_branch
      %30 = sbr.rel (0) target = $region17
    $region16: #{action_conditioned_ff.1} parent=1 // pred_region
      %s32 = ssub.s32 1024, 1024
      %33 = vsyncadd [#allocation4], %s32
      %s34 = sshll.u32 [#allocation3], 4
      %s35 = int_to_ptr.vmem [resolvable:$true] %s34
      %40 = dma.hbm_to_vmem [thread:$0]  %s3, 1024, %s35, [#allocation4], 64, 64, 4
    $region17: #{action_conditioned_ff.1} parent=1 // pred_fallthru
      _
    // Predicated region
    $region18: #{action_conditioned_ff.1} parent=1 // pred_check
      _
    $region19: #{action_conditioned_ff.1} parent=1 // pred_check_branch
      %42 = sbr.rel (0) target = $region21
    $region20: #{action_conditioned_ff.1} parent=1 // pred_region
      _
    $region21: #{action_conditioned_ff.1} parent=1 // pred_fallthru
      _
    // Predicated region
    $region22: #{action_conditioned_ff.1} parent=1 // pred_check
      _
    $region23: #{action_conditioned_ff.1} parent=1 // pred_check_branch
      %44 = sbr.rel (0) target = $region25
    $region24: #{action_conditioned_ff.1} parent=1 // pred_region
      %s46 = ssub.s32 2048, 2048
      %47 = vsyncadd [#allocation6], %s46
      %s48 = sshll.u32 [#allocation5], 4
      %s49 = int_to_ptr.vmem [resolvable:$true] %s48
      %54 = dma.hbm_to_vmem [thread:$0]  %s5, 2048, %s49, [#allocation6], 128, 128, 8
    $region25: #{action_conditioned_ff.1} parent=1 // pred_fallthru
      _
    // Predicated region
    $region26: #{action_conditioned_ff.1} parent=1 // pred_check
      _
    $region27: #{action_conditioned_ff.1} parent=1 // pred_check_branch
      %56 = sbr.rel (0) target = $region29
    $region28: #{action_conditioned_ff.1} parent=1 // pred_region
      _
    $region29: #{action_conditioned_ff.1} parent=1 // pred_fallthru
      _
    // Predicated region
    $region30: #{action_conditioned_ff.1} parent=1 // pred_check
      _
    $region31: #{action_conditioned_ff.1} parent=1 // pred_check_branch
      %58 = sbr.rel (0) target = $region33
    $region32: #{action_conditioned_ff.1} parent=1 // pred_region
      %s60 = ssub.s32 2048, 2048
      %61 = vsyncadd [#allocation6], %s60
      %s62 = sshll.u32 [#allocation7], 4
      %s63 = int_to_ptr.vmem [resolvable:$true] %s62
      %68 = dma.hbm_to_vmem [thread:$0]  %s7, 2048, %s63, [#allocation6], 64, 64, 4
    $region33: #{action_conditioned_ff.1} parent=1 // pred_fallthru
      _
    // Predicated region
    $region34: #{action_conditioned_ff.1} parent=1 // pred_check
      _
    $region35: #{action_conditioned_ff.1} parent=1 // pred_check_branch
      %70 = sbr.rel (0) target = $region37
    $region36: #{action_conditioned_ff.1} parent=1 // pred_region
      _
    $region37: #{action_conditioned_ff.1} parent=1 // pred_fallthru
      _
    // Predicated region
    $region38: #{action_conditioned_ff.1} parent=1 // pred_check
      _
    $region39: #{action_conditioned_ff.1} parent=1 // pred_check_branch
      %72 = sbr.rel (0) target = $region41
    $region40: #{action_conditioned_ff.1} parent=1 // pred_region
      %s74 = ssub.s32 1024, 1024
      %75 = vsyncadd [#allocation9], %s74
      %s76 = sshll.u32 [#allocation8], 4
      %s77 = int_to_ptr.vmem [resolvable:$true] %s76
      %82 = dma.hbm_to_vmem [thread:$0]  %s9, 1024, %s77, [#allocation9], 64, 64, 4
    $region41: #{action_conditioned_ff.1} parent=1 // pred_fallthru
      _
    // Predicated region
    $region42: #{action_conditioned_ff.1} parent=1 // pred_check
      _
    $region43: #{action_conditioned_ff.1} parent=1 // pred_check_branch
      %84 = sbr.rel (0) target = $region45
    $region44: #{action_conditioned_ff.1} parent=1 // pred_region
      _
    $region45: #{action_conditioned_ff.1} parent=1 // pred_fallthru
      _
    // Predicated region
    $region46: #{action_conditioned_ff.1} parent=1 // pred_check
      _
    $region47: #{action_conditioned_ff.1} parent=1 // pred_check_branch
      %86 = sbr.rel (0) target = $region49
    $region48: #{action_conditioned_ff.1} parent=1 // pred_region
      _
    $region49: #{action_conditioned_ff.1} parent=1 // pred_fallthru
      _
    // Predicated region
    $region50: #{action_conditioned_ff.1} parent=1 // pred_check
      _
    $region51: #{action_conditioned_ff.1} parent=1 // pred_check_branch
      %88 = sbr.rel (0) target = $region53
    $region52: #{action_conditioned_ff.1} parent=1 // pred_region
      _
    $region53: #{action_conditioned_ff.1} parent=1 // pred_fallthru
      _
    // Predicated region
    $region54: #{action_conditioned_ff.1} parent=1 // pred_check
      _
    $region55: #{action_conditioned_ff.1} parent=1 // pred_check_branch
      %90 = sbr.rel (0) target = $region57
    $region56: #{action_conditioned_ff.1} parent=1 // pred_region
      %91 = dma.done [#allocation4], 1024
    $region57: #{action_conditioned_ff.1} parent=1 // pred_fallthru
      _
    // Predicated region
    $region58: #{action_conditioned_ff.1} parent=1 // pred_check
      _
    $region59: #{action_conditioned_ff.1} parent=1 // pred_check_branch
      %93 = sbr.rel (0) target = $region61
    $region60: #{action_conditioned_ff.1} parent=1 // pred_region
      %94 = dma.done [#allocation6], 2048
    $region61: #{action_conditioned_ff.1} parent=1 // pred_fallthru
      _
    // Predicated region
    $region62: #{action_conditioned_ff.1} parent=1 // pred_check
      _
    $region63: #{action_conditioned_ff.1} parent=1 // pred_check_branch
      %96 = sbr.rel (0) target = $region65
    $region64: #{action_conditioned_ff.1} parent=1 // pred_region
      %97 = dma.done [#allocation6], 2048
    $region65: #{action_conditioned_ff.1} parent=1 // pred_fallthru
      _
    // Predicated region
    $region66: #{action_conditioned_ff.1} parent=1 // pred_check
      _
    $region67: #{action_conditioned_ff.1} parent=1 // pred_check_branch
      %99 = sbr.rel (0) target = $region69
    $region68: #{action_conditioned_ff.1} parent=1 // pred_region
      %100 = dma.done [#allocation9], 1024
    $region69: #{action_conditioned_ff.1} parent=1 // pred_fallthru
      _
    %v102 = vld [vmem:[%s0] sm:$0xf]
    %v103 = vld [vmem:[%s0 + $0x4] sm:$0xf]
    %v104 = vld [vmem:[%s1] sm:$0xf]
    %v107 = vunpack.c.l.b16 %v102
    %v108 = vunpack.c.l.b16 %v103
    %v109 = vpack.c.b16 %v108, %v107
    %vm110 = vcmask 64512
    %v112 = vsel %vm110, %v109, 0
    %vm114 = vcmask 1043456
    %v116 = vsel %vm114, %v104, 0
    %118 = vmatprep.subr.bf16.mxu0 0
    %119 = vmatpush1.bf16.msra.mxu0 %v116
    %120 = vmatprep.subr.bf16.mxu0 0
    %121 = vmatpush1.bf16.msra.mxu0 0
    %122 = vmatprep.subr.bf16.mxu0 0
    %123 = vmatpush1.bf16.msra.mxu0 0
    %124 = vmatprep.subr.bf16.mxu0 0
    %125 = vmatpush1.bf16.msra.mxu0 0
    %126 = vmatprep.subr.bf16.mxu0 0
    %127 = vmatpush1.bf16.msra.mxu0 0
    %128 = vmatprep.subr.bf16.mxu0 0
    %129 = vmatpush1.bf16.msra.mxu0 0
    %130 = vmatprep.subr.bf16.mxu0 0
    %131 = vmatpush1.bf16.msra.mxu0 0
    %132 = vmatprep.subr.bf16.mxu0 0
    %133 = vmatpush1.bf16.msra.mxu0 0
    %134 = vmatprep.subr.bf16.mxu0 0
    %135 = vmatpush1.bf16.msra.mxu0 0
    %136 = vmatprep.subr.bf16.mxu0 0
    %137 = vmatpush1.bf16.msra.mxu0 0
    %138 = vmatprep.subr.bf16.mxu0 0
    %139 = vmatpush1.bf16.msra.mxu0 0
    %140 = vmatprep.subr.bf16.mxu0 0
    %141 = vmatpush1.bf16.msra.mxu0 0
    %142 = vmatprep.subr.bf16.mxu0 0
    %143 = vmatpush1.bf16.msra.mxu0 0
    %144 = vmatprep.subr.bf16.mxu0 0
    %145 = vmatpush1.bf16.msra.mxu0 0
    %146 = vmatprep.subr.bf16.mxu0 0
    %147 = vmatpush1.bf16.msra.mxu0 0
    %148 = vmatprep.subr.bf16.mxu0 0
    %149 = vmatpush1.bf16.msra.mxu0 0
    %150 = vmatprep.mubr.bf16.mxu0 0
    %151 = vmatmul.mubr.bf16.gmra.mrb[0].mxu0 %v112
    %v152 = vpop.f32.mrb[0].mxu0
    %v153 = vadd.f32 0.0, %v152
    %v154 = vpop.f32.mrb[0].mxu0
    %v155 = vpop.f32.mrb[0].mxu0
    %v156 = vadd.f32 0.0, %v155
    %v157 = vpop.f32.mrb[0].mxu0
    %158 = vdwg.mxu0
    %v159 = vpack.c.bf16 %v156, %v153
    %v160 = vld [vmem:[%s2] sm:$0x1]
    %v162 = vpack.i.b16 %v160, %v160
    %v164 = vlaneseq
    %v165 = vshrl.u32 %v164, 7
    %v166 = vsub.s32 0, %v165
    %v167 = vrot.slane %v162, %v166
    %v168 = vadd.bf16 %v159, %v167
    %v169 = vmax.bf16 %v168, 0
    %v170 = vld [vmem:[#allocation3] sm:$0xf]
    %v171 = vld [vmem:[#allocation3 + $0x4] sm:$0xf]
    %v172 = vld [vmem:[#allocation3 + $0x8] sm:$0xf]
    %v173 = vld [vmem:[#allocation3 + $0xc] sm:$0xf]
    %v174 = vld [vmem:[#allocation3 + $0x10] sm:$0xf]
    %v175 = vld [vmem:[#allocation3 + $0x14] sm:$0xf]
    %v176 = vld [vmem:[#allocation3 + $0x18] sm:$0xf]
    %v177 = vld [vmem:[#allocation3 + $0x1c] sm:$0xf]
    %v178 = vld [vmem:[#allocation3 + $0x20] sm:$0xf]
    %v179 = vld [vmem:[#allocation3 + $0x24] sm:$0xf]
    %v180 = vld [vmem:[#allocation3 + $0x28] sm:$0xf]
    %v181 = vld [vmem:[#allocation3 + $0x2c] sm:$0xf]
    %v182 = vld [vmem:[#allocation3 + $0x30] sm:$0xf]
    %v183 = vld [vmem:[#allocation3 + $0x34] sm:$0xf]
    %v184 = vld [vmem:[#allocation3 + $0x38] sm:$0xf]
    %v185 = vld [vmem:[#allocation3 + $0x3c] sm:$0xf]
    %v202 = vunpack.c.l.b16 %v170
    %v203 = vunpack.c.l.b16 %v171
    %v204 = vunpack.c.l.b16 %v172
    %v205 = vunpack.c.l.b16 %v173
    %v206 = vunpack.c.l.b16 %v174
    %v207 = vunpack.c.l.b16 %v175
    %v208 = vunpack.c.l.b16 %v176
    %v209 = vunpack.c.l.b16 %v177
    %v210 = vunpack.c.l.b16 %v178
    %v211 = vunpack.c.l.b16 %v179
    %v212 = vunpack.c.l.b16 %v180
    %v213 = vunpack.c.l.b16 %v181
    %v214 = vunpack.c.l.b16 %v182
    %v215 = vunpack.c.l.b16 %v183
    %v216 = vunpack.c.l.b16 %v184
    %v217 = vunpack.c.l.b16 %v185
    %v218 = vpack.c.b16 %v203, %v202
    %v219 = vpack.c.b16 %v205, %v204
    %v220 = vpack.c.b16 %v207, %v206
    %v221 = vpack.c.b16 %v209, %v208
    %v222 = vpack.c.b16 %v211, %v210
    %v223 = vpack.c.b16 %v213, %v212
    %v224 = vpack.c.b16 %v215, %v214
    %v225 = vpack.c.b16 %v217, %v216
    %234 = vmatprep.subr.bf16.mxu0 0
    %235 = vmatpush1.bf16.msra.mxu0 %v218
    %236 = vmatprep.subr.bf16.mxu0 0
    %237 = vmatpush1.bf16.msra.mxu0 %v219
    %238 = vmatprep.subr.bf16.mxu0 0
    %239 = vmatpush1.bf16.msra.mxu0 %v220
    %240 = vmatprep.subr.bf16.mxu0 0
    %241 = vmatpush1.bf16.msra.mxu0 %v221
    %242 = vmatprep.subr.bf16.mxu0 0
    %243 = vmatpush1.bf16.msra.mxu0 %v222
    %244 = vmatprep.subr.bf16.mxu0 0
    %245 = vmatpush1.bf16.msra.mxu0 %v223
    %246 = vmatprep.subr.bf16.mxu0 0
    %247 = vmatpush1.bf16.msra.mxu0 %v224
    %248 = vmatprep.subr.bf16.mxu0 0
    %249 = vmatpush1.bf16.msra.mxu0 %v225
    %250 = vmatprep.subr.bf16.mxu0 0
    %251 = vmatpush1.bf16.msra.mxu0 0
    %252 = vmatprep.subr.bf16.mxu0 0
    %253 = vmatpush1.bf16.msra.mxu0 0
    %254 = vmatprep.subr.bf16.mxu0 0
    %255 = vmatpush1.bf16.msra.mxu0 0
    %256 = vmatprep.subr.bf16.mxu0 0
    %257 = vmatpush1.bf16.msra.mxu0 0
    %258 = vmatprep.subr.bf16.mxu0 0
    %259 = vmatpush1.bf16.msra.mxu0 0
    %260 = vmatprep.subr.bf16.mxu0 0
    %261 = vmatpush1.bf16.msra.mxu0 0
    %262 = vmatprep.subr.bf16.mxu0 0
    %263 = vmatpush1.bf16.msra.mxu0 0
    %264 = vmatprep.subr.bf16.mxu0 0
    %265 = vmatpush1.bf16.msra.mxu0 0
    %266 = vmatprep.mubr.bf16.mxu0 0
    %267 = vmatmul.mubr.bf16.gmra.mrb[0].mxu0 %v169
    %v268 = vpop.f32.mrb[0].mxu0
    %v269 = vadd.f32 0.0, %v268
    %v270 = vpop.f32.mrb[0].mxu0
    %v271 = vpop.f32.mrb[0].mxu0
    %v272 = vadd.f32 0.0, %v271
    %v273 = vpop.f32.mrb[0].mxu0
    %274 = vdwg.mxu0
    %v275 = vpack.c.bf16 %v272, %v269
    %v276 = vld [vmem:[%s4] sm:$0x1]
    %v278 = vpack.i.b16 %v276, %v276
    %v280 = vlaneseq
    %v281 = vshrl.u32 %v280, 7
    %v282 = vsub.s32 0, %v281
    %v283 = vrot.slane %v278, %v282
    %v284 = vadd.bf16 %v275, %v283
    %v285 = vmax.bf16 %v284, 0
    %v286 = vld [vmem:[#allocation5] sm:$0xff]
    %v287 = vld [vmem:[#allocation5 + $0x8] sm:$0xff]
    %v288 = vld [vmem:[#allocation5 + $0x10] sm:$0xff]
    %v289 = vld [vmem:[#allocation5 + $0x18] sm:$0xff]
    %v290 = vld [vmem:[#allocation5 + $0x20] sm:$0xff]
    %v291 = vld [vmem:[#allocation5 + $0x28] sm:$0xff]
    %v292 = vld [vmem:[#allocation5 + $0x30] sm:$0xff]
    %v293 = vld [vmem:[#allocation5 + $0x38] sm:$0xff]
    %v294 = vld [vmem:[#allocation5 + $0x40] sm:$0xff]
    %v295 = vld [vmem:[#allocation5 + $0x48] sm:$0xff]
    %v296 = vld [vmem:[#allocation5 + $0x50] sm:$0xff]
    %v297 = vld [vmem:[#allocation5 + $0x58] sm:$0xff]
    %v298 = vld [vmem:[#allocation5 + $0x60] sm:$0xff]
    %v299 = vld [vmem:[#allocation5 + $0x68] sm:$0xff]
    %v300 = vld [vmem:[#allocation5 + $0x70] sm:$0xff]
    %v301 = vld [vmem:[#allocation5 + $0x78] sm:$0xff]
    %v318 = vunpack.c.l.b16 %v286
    %v319 = vunpack.c.h.b16 %v286
    %v320 = vunpack.c.l.b16 %v287
    %v321 = vunpack.c.h.b16 %v287
    %v322 = vunpack.c.l.b16 %v288
    %v323 = vunpack.c.h.b16 %v288
    %v324 = vunpack.c.l.b16 %v289
    %v325 = vunpack.c.h.b16 %v289
    %v326 = vunpack.c.l.b16 %v290
    %v327 = vunpack.c.h.b16 %v290
    %v328 = vunpack.c.l.b16 %v291
    %v329 = vunpack.c.h.b16 %v291
    %v330 = vunpack.c.l.b16 %v292
    %v331 = vunpack.c.h.b16 %v292
    %v332 = vunpack.c.l.b16 %v293
    %v333 = vunpack.c.h.b16 %v293
    %v334 = vunpack.c.l.b16 %v294
    %v335 = vunpack.c.h.b16 %v294
    %v336 = vunpack.c.l.b16 %v295
    %v337 = vunpack.c.h.b16 %v295
    %v338 = vunpack.c.l.b16 %v296
    %v339 = vunpack.c.h.b16 %v296
    %v340 = vunpack.c.l.b16 %v297
    %v341 = vunpack.c.h.b16 %v297
    %v342 = vunpack.c.l.b16 %v298
    %v343 = vunpack.c.h.b16 %v298
    %v344 = vunpack.c.l.b16 %v299
    %v345 = vunpack.c.h.b16 %v299
    %v346 = vunpack.c.l.b16 %v300
    %v347 = vunpack.c.h.b16 %v300
    %v348 = vunpack.c.l.b16 %v301
    %v349 = vunpack.c.h.b16 %v301
    %v350 = vpack.c.b16 %v320, %v318
    %v351 = vpack.c.b16 %v321, %v319
    %v352 = vpack.c.b16 %v324, %v322
    %v353 = vpack.c.b16 %v325, %v323
    %v354 = vpack.c.b16 %v328, %v326
    %v355 = vpack.c.b16 %v329, %v327
    %v356 = vpack.c.b16 %v332, %v330
    %v357 = vpack.c.b16 %v333, %v331
    %v358 = vpack.c.b16 %v336, %v334
    %v359 = vpack.c.b16 %v337, %v335
    %v360 = vpack.c.b16 %v340, %v338
    %v361 = vpack.c.b16 %v341, %v339
    %v362 = vpack.c.b16 %v344, %v342
    %v363 = vpack.c.b16 %v345, %v343
    %v364 = vpack.c.b16 %v348, %v346
    %v365 = vpack.c.b16 %v349, %v347
    %382 = vmatprep.subr.bf16.mxu0 %v351
    %383 = vmatpush1.bf16.msra.mxu0 %v350
    %384 = vmatprep.subr.bf16.mxu0 %v353
    %385 = vmatpush1.bf16.msra.mxu0 %v352
    %386 = vmatprep.subr.bf16.mxu0 %v355
    %387 = vmatpush1.bf16.msra.mxu0 %v354
    %388 = vmatprep.subr.bf16.mxu0 %v357
    %389 = vmatpush1.bf16.msra.mxu0 %v356
    %390 = vmatprep.subr.bf16.mxu0 %v359
    %391 = vmatpush1.bf16.msra.mxu0 %v358
    %392 = vmatprep.subr.bf16.mxu0 %v361
    %393 = vmatpush1.bf16.msra.mxu0 %v360
    %394 = vmatprep.subr.bf16.mxu0 %v363
    %395 = vmatpush1.bf16.msra.mxu0 %v362
    %396 = vmatprep.subr.bf16.mxu0 %v365
    %397 = vmatpush1.bf16.msra.mxu0 %v364
    %398 = vmatprep.subr.bf16.mxu0 0
    %399 = vmatpush1.bf16.msra.mxu0 0
    %400 = vmatprep.subr.bf16.mxu0 0
    %401 = vmatpush1.bf16.msra.mxu0 0
    %402 = vmatprep.subr.bf16.mxu0 0
    %403 = vmatpush1.bf16.msra.mxu0 0
    %404 = vmatprep.subr.bf16.mxu0 0
    %405 = vmatpush1.bf16.msra.mxu0 0
    %406 = vmatprep.subr.bf16.mxu0 0
    %407 = vmatpush1.bf16.msra.mxu0 0
    %408 = vmatprep.subr.bf16.mxu0 0
    %409 = vmatpush1.bf16.msra.mxu0 0
    %410 = vmatprep.subr.bf16.mxu0 0
    %411 = vmatpush1.bf16.msra.mxu0 0
    %412 = vmatprep.subr.bf16.mxu0 0
    %413 = vmatpush1.bf16.msra.mxu0 0
    %414 = vmatprep.mubr.bf16.mxu0 0
    %415 = vmatmul.mubr.bf16.gmra.mrb[0].mxu0 %v285
    %v416 = vpop.f32.mrb[0].mxu0
    %v417 = vadd.f32 0.0, %v416
    %v418 = vpop.f32.mrb[0].mxu0
    %v419 = vadd.f32 0.0, %v418
    %v420 = vpop.f32.mrb[0].mxu0
    %v421 = vadd.f32 0.0, %v420
    %v422 = vpop.f32.mrb[0].mxu0
    %v423 = vadd.f32 0.0, %v422
    %424 = vdwg.mxu0
    %v425 = vpack.c.bf16 %v421, %v417
    %v426 = vpack.c.bf16 %v423, %v419
    %v427 = vld [vmem:[%s6] sm:$0x3]
    %v430 = vunpack.c.l.s4 1966171168
    %v431 = vunpack.c.0.s8 %v430
    %v432 = vlaneseq
    %v433 = vshrl.u32 %v432, 7
    %v434 = vsub.s32 %v431, %v433
    %v435 = vrot.slane %v427, %v434
    %v436 = vcombine.high %v435, %v435
    %v438 = vunpack.c.l.s4 1966171168
    %v439 = vunpack.c.0.s8 %v438
    %v440 = vlaneseq
    %v441 = vshrl.u32 %v440, 7
    %v442 = vsub.s32 %v439, %v441
    %v443 = vrot.slane %v435, %v442
    %v445 = vunpack.c.l.s4 1966171168
    %v446 = vunpack.c.0.s8 %v445
    %v447 = vlaneseq
    %v448 = vshrl.u32 %v447, 7
    %v449 = vsub.s32 %v446, %v448
    %v450 = vrot.slane %v436, %v449
    %v452 = vpack.i.b16 %v443, %v443
    %v454 = vlaneseq
    %v455 = vshrl.u32 %v454, 7
    %v456 = vsub.s32 0, %v455
    %v457 = vrot.slane %v452, %v456
    %v459 = vpack.i.b16 %v450, %v450
    %v461 = vlaneseq
    %v462 = vshrl.u32 %v461, 7
    %v463 = vsub.s32 0, %v462
    %v464 = vrot.slane %v459, %v463
    %v465 = vadd.bf16 %v425, %v457
    %v466 = vadd.bf16 %v426, %v464
    %v467 = vmax.bf16 %v465, 0
    %v468 = vmax.bf16 %v466, 0
    %v469 = vld [vmem:[#allocation7] sm:$0xf]
    %v470 = vld [vmem:[#allocation7 + $0x4] sm:$0xf]
    %v471 = vld [vmem:[#allocation7 + $0x8] sm:$0xf]
    %v472 = vld [vmem:[#allocation7 + $0xc] sm:$0xf]
    %v473 = vld [vmem:[#allocation7 + $0x10] sm:$0xf]
    %v474 = vld [vmem:[#allocation7 + $0x14] sm:$0xf]
    %v475 = vld [vmem:[#allocation7 + $0x18] sm:$0xf]
    %v476 = vld [vmem:[#allocation7 + $0x1c] sm:$0xf]
    %v477 = vld [vmem:[#allocation7 + $0x20] sm:$0xf]
    %v478 = vld [vmem:[#allocation7 + $0x24] sm:$0xf]
    %v479 = vld [vmem:[#allocation7 + $0x28] sm:$0xf]
    %v480 = vld [vmem:[#allocation7 + $0x2c] sm:$0xf]
    %v481 = vld [vmem:[#allocation7 + $0x30] sm:$0xf]
    %v482 = vld [vmem:[#allocation7 + $0x34] sm:$0xf]
    %v483 = vld [vmem:[#allocation7 + $0x38] sm:$0xf]
    %v484 = vld [vmem:[#allocation7 + $0x3c] sm:$0xf]
    %v485 = vld [vmem:[#allocation7 + $0x40] sm:$0xf]
    %v486 = vld [vmem:[#allocation7 + $0x44] sm:$0xf]
    %v487 = vld [vmem:[#allocation7 + $0x48] sm:$0xf]
    %v488 = vld [vmem:[#allocation7 + $0x4c] sm:$0xf]
    %v489 = vld [vmem:[#allocation7 + $0x50] sm:$0xf]
    %v490 = vld [vmem:[#allocation7 + $0x54] sm:$0xf]
    %v491 = vld [vmem:[#allocation7 + $0x58] sm:$0xf]
    %v492 = vld [vmem:[#allocation7 + $0x5c] sm:$0xf]
    %v493 = vld [vmem:[#allocation7 + $0x60] sm:$0xf]
    %v494 = vld [vmem:[#allocation7 + $0x64] sm:$0xf]
    %v495 = vld [vmem:[#allocation7 + $0x68] sm:$0xf]
    %v496 = vld [vmem:[#allocation7 + $0x6c] sm:$0xf]
    %v497 = vld [vmem:[#allocation7 + $0x70] sm:$0xf]
    %v498 = vld [vmem:[#allocation7 + $0x74] sm:$0xf]
    %v499 = vld [vmem:[#allocation7 + $0x78] sm:$0xf]
    %v500 = vld [vmem:[#allocation7 + $0x7c] sm:$0xf]
    %v533 = vunpack.c.l.b16 %v469
    %v534 = vunpack.c.l.b16 %v470
    %v535 = vunpack.c.l.b16 %v471
    %v536 = vunpack.c.l.b16 %v472
    %v537 = vunpack.c.l.b16 %v473
    %v538 = vunpack.c.l.b16 %v474
    %v539 = vunpack.c.l.b16 %v475
    %v540 = vunpack.c.l.b16 %v476
    %v541 = vunpack.c.l.b16 %v477
    %v542 = vunpack.c.l.b16 %v478
    %v543 = vunpack.c.l.b16 %v479
    %v544 = vunpack.c.l.b16 %v480
    %v545 = vunpack.c.l.b16 %v481
    %v546 = vunpack.c.l.b16 %v482
    %v547 = vunpack.c.l.b16 %v483
    %v548 = vunpack.c.l.b16 %v484
    %v549 = vunpack.c.l.b16 %v485
    %v550 = vunpack.c.l.b16 %v486
    %v551 = vunpack.c.l.b16 %v487
    %v552 = vunpack.c.l.b16 %v488
    %v553 = vunpack.c.l.b16 %v489
    %v554 = vunpack.c.l.b16 %v490
    %v555 = vunpack.c.l.b16 %v491
    %v556 = vunpack.c.l.b16 %v492
    %v557 = vunpack.c.l.b16 %v493
    %v558 = vunpack.c.l.b16 %v494
    %v559 = vunpack.c.l.b16 %v495
    %v560 = vunpack.c.l.b16 %v496
    %v561 = vunpack.c.l.b16 %v497
    %v562 = vunpack.c.l.b16 %v498
    %v563 = vunpack.c.l.b16 %v499
    %v564 = vunpack.c.l.b16 %v500
    %v565 = vpack.c.b16 %v534, %v533
    %v566 = vpack.c.b16 %v536, %v535
    %v567 = vpack.c.b16 %v538, %v537
    %v568 = vpack.c.b16 %v540, %v539
    %v569 = vpack.c.b16 %v542, %v541
    %v570 = vpack.c.b16 %v544, %v543
    %v571 = vpack.c.b16 %v546, %v545
    %v572 = vpack.c.b16 %v548, %v547
    %v573 = vpack.c.b16 %v550, %v549
    %v574 = vpack.c.b16 %v552, %v551
    %v575 = vpack.c.b16 %v554, %v553
    %v576 = vpack.c.b16 %v556, %v555
    %v577 = vpack.c.b16 %v558, %v557
    %v578 = vpack.c.b16 %v560, %v559
    %v579 = vpack.c.b16 %v562, %v561
    %v580 = vpack.c.b16 %v564, %v563
    %597 = vmatprep.subr.bf16.mxu0 0
    %598 = vmatpush1.bf16.msra.mxu0 %v565
    %599 = vmatprep.subr.bf16.mxu0 0
    %600 = vmatpush1.bf16.msra.mxu0 %v566
    %601 = vmatprep.subr.bf16.mxu0 0
    %602 = vmatpush1.bf16.msra.mxu0 %v567
    %603 = vmatprep.subr.bf16.mxu0 0
    %604 = vmatpush1.bf16.msra.mxu0 %v568
    %605 = vmatprep.subr.bf16.mxu0 0
    %606 = vmatpush1.bf16.msra.mxu0 %v569
    %607 = vmatprep.subr.bf16.mxu0 0
    %608 = vmatpush1.bf16.msra.mxu0 %v570
    %609 = vmatprep.subr.bf16.mxu0 0
    %610 = vmatpush1.bf16.msra.mxu0 %v571
    %611 = vmatprep.subr.bf16.mxu0 0
    %612 = vmatpush1.bf16.msra.mxu0 %v572
    %613 = vmatprep.subr.bf16.mxu0 0
    %614 = vmatpush1.bf16.msra.mxu0 %v573
    %615 = vmatprep.subr.bf16.mxu0 0
    %616 = vmatpush1.bf16.msra.mxu0 %v574
    %617 = vmatprep.subr.bf16.mxu0 0
    %618 = vmatpush1.bf16.msra.mxu0 %v575
    %619 = vmatprep.subr.bf16.mxu0 0
    %620 = vmatpush1.bf16.msra.mxu0 %v576
    %621 = vmatprep.subr.bf16.mxu0 0
    %622 = vmatpush1.bf16.msra.mxu0 %v577
    %623 = vmatprep.subr.bf16.mxu0 0
    %624 = vmatpush1.bf16.msra.mxu0 %v578
    %625 = vmatprep.subr.bf16.mxu0 0
    %626 = vmatpush1.bf16.msra.mxu0 %v579
    %627 = vmatprep.subr.bf16.mxu0 0
    %628 = vmatpush1.bf16.msra.mxu0 %v580
    %629 = vmatprep.mubr.bf16.mxu0 %v468
    %630 = vmatmul.mubr.bf16.gmra.mrb[0].mxu0 %v467
    %v631 = vpop.f32.mrb[0].mxu0
    %v632 = vadd.f32 0.0, %v631
    %v633 = vpop.f32.mrb[0].mxu0
    %v634 = vpop.f32.mrb[0].mxu0
    %v635 = vadd.f32 0.0, %v634
    %v636 = vpop.f32.mrb[0].mxu0
    %637 = vdwg.mxu0
    %v638 = vpack.c.bf16 %v635, %v632
    %v639 = vld [vmem:[%s8] sm:$0x1]
    %v641 = vpack.i.b16 %v639, %v639
    %v643 = vlaneseq
    %v644 = vshrl.u32 %v643, 7
    %v645 = vsub.s32 0, %v644
    %v646 = vrot.slane %v641, %v645
    %v647 = vadd.bf16 %v638, %v646
    %v648 = vmax.bf16 %v647, 0
    %v649 = vld [vmem:[#allocation8] sm:$0xf]
    %v650 = vld [vmem:[#allocation8 + $0x4] sm:$0xf]
    %v651 = vld [vmem:[#allocation8 + $0x8] sm:$0xf]
    %v652 = vld [vmem:[#allocation8 + $0xc] sm:$0xf]
    %v653 = vld [vmem:[#allocation8 + $0x10] sm:$0xf]
    %v654 = vld [vmem:[#allocation8 + $0x14] sm:$0xf]
    %v655 = vld [vmem:[#allocation8 + $0x18] sm:$0xf]
    %v656 = vld [vmem:[#allocation8 + $0x1c] sm:$0xf]
    %v657 = vld [vmem:[#allocation8 + $0x20] sm:$0xf]
    %v658 = vld [vmem:[#allocation8 + $0x24] sm:$0xf]
    %v659 = vld [vmem:[#allocation8 + $0x28] sm:$0xf]
    %v660 = vld [vmem:[#allocation8 + $0x2c] sm:$0xf]
    %v661 = vld [vmem:[#allocation8 + $0x30] sm:$0xf]
    %v662 = vld [vmem:[#allocation8 + $0x34] sm:$0xf]
    %v663 = vld [vmem:[#allocation8 + $0x38] sm:$0xf]
    %v664 = vld [vmem:[#allocation8 + $0x3c] sm:$0xf]
    %v681 = vunpack.c.l.b16 %v649
    %v682 = vunpack.c.l.b16 %v650
    %v683 = vunpack.c.l.b16 %v651
    %v684 = vunpack.c.l.b16 %v652
    %v685 = vunpack.c.l.b16 %v653
    %v686 = vunpack.c.l.b16 %v654
    %v687 = vunpack.c.l.b16 %v655
    %v688 = vunpack.c.l.b16 %v656
    %v689 = vunpack.c.l.b16 %v657
    %v690 = vunpack.c.l.b16 %v658
    %v691 = vunpack.c.l.b16 %v659
    %v692 = vunpack.c.l.b16 %v660
    %v693 = vunpack.c.l.b16 %v661
    %v694 = vunpack.c.l.b16 %v662
    %v695 = vunpack.c.l.b16 %v663
    %v696 = vunpack.c.l.b16 %v664
    %v697 = vpack.c.b16 %v682, %v681
    %v698 = vpack.c.b16 %v684, %v683
    %v699 = vpack.c.b16 %v686, %v685
    %v700 = vpack.c.b16 %v688, %v687
    %v701 = vpack.c.b16 %v690, %v689
    %v702 = vpack.c.b16 %v692, %v691
    %v703 = vpack.c.b16 %v694, %v693
    %v704 = vpack.c.b16 %v696, %v695
    %713 = vmatprep.subr.bf16.mxu0 0
    %714 = vmatpush1.bf16.msra.mxu0 %v697
    %715 = vmatprep.subr.bf16.mxu0 0
    %716 = vmatpush1.bf16.msra.mxu0 %v698
    %717 = vmatprep.subr.bf16.mxu0 0
    %718 = vmatpush1.bf16.msra.mxu0 %v699
    %719 = vmatprep.subr.bf16.mxu0 0
    %720 = vmatpush1.bf16.msra.mxu0 %v700
    %721 = vmatprep.subr.bf16.mxu0 0
    %722 = vmatpush1.bf16.msra.mxu0 %v701
    %723 = vmatprep.subr.bf16.mxu0 0
    %724 = vmatpush1.bf16.msra.mxu0 %v702
    %725 = vmatprep.subr.bf16.mxu0 0
    %726 = vmatpush1.bf16.msra.mxu0 %v703
    %727 = vmatprep.subr.bf16.mxu0 0
    %728 = vmatpush1.bf16.msra.mxu0 %v704
    %729 = vmatprep.subr.bf16.mxu0 0
    %730 = vmatpush1.bf16.msra.mxu0 0
    %731 = vmatprep.subr.bf16.mxu0 0
    %732 = vmatpush1.bf16.msra.mxu0 0
    %733 = vmatprep.subr.bf16.mxu0 0
    %734 = vmatpush1.bf16.msra.mxu0 0
    %735 = vmatprep.subr.bf16.mxu0 0
    %736 = vmatpush1.bf16.msra.mxu0 0
    %737 = vmatprep.subr.bf16.mxu0 0
    %738 = vmatpush1.bf16.msra.mxu0 0
    %739 = vmatprep.subr.bf16.mxu0 0
    %740 = vmatpush1.bf16.msra.mxu0 0
    %741 = vmatprep.subr.bf16.mxu0 0
    %742 = vmatpush1.bf16.msra.mxu0 0
    %743 = vmatprep.subr.bf16.mxu0 0
    %744 = vmatpush1.bf16.msra.mxu0 0
    %745 = vmatprep.mubr.bf16.mxu0 0
    %746 = vmatmul.mubr.bf16.gmra.mrb[0].mxu0 %v648
    %v747 = vpop.f32.mrb[0].mxu0
    %v748 = vadd.f32 0.0, %v747
    %v749 = vpop.f32.mrb[0].mxu0
    %v750 = vpop.f32.mrb[0].mxu0
    %v751 = vadd.f32 0.0, %v750
    %v752 = vpop.f32.mrb[0].mxu0
    %753 = vdwg.mxu0
    %v754 = vpack.c.bf16 %v751, %v748
    %v755 = vld [vmem:[%s10] sm:$0x1]
    %v757 = vpack.i.b16 %v755, %v755
    %v759 = vlaneseq
    %v760 = vshrl.u32 %v759, 7
    %v761 = vsub.s32 0, %v760
    %v762 = vrot.slane %v757, %v761
    %v763 = vadd.bf16 %v754, %v762
    %v764 = vmax.bf16 %v763, 0
    %v765 = vunpack.c.l.bf16 %v764
    %v766 = vunpack.c.h.bf16 %v764
    %v767 = vld [vmem:[%s11] sm:$0x1]
    %v769 = vlaneseq
    %v770 = vshrl.u32 %v769, 7
    %v771 = vsub.s32 0, %v770
    %v772 = vrot.slane %v767, %v771
    %v774 = vmul.f32 %v765, %v772
    %v775 = vmul.f32 %v766, %v772
    %776 = vadd.xlane.f32.xlu0 %v774
    %v777 = vpop.xlane.xlu0 %776
    %778 = vadd.xlane.f32.xlu0 %v775
    %v779 = vpop.xlane.xlu0 %778
    %v780 = vld [vmem:[#allocation2] sm:$0x1]
    %v782 = vlaneseq
    %v783 = vshrl.u32 %v782, 7
    %v784 = vsub.s32 0, %v783
    %v785 = vrot.slane %v780, %v784
    %v787 = vadd.f32 %v777, %v785
    %v788 = vadd.f32 %v779, %v785
    %v789 = vmax.f32 %v787, 0.0
    %v790 = vmax.f32 %v788, 0.0
    %vm791 = vcmask 7168
    %792 = vst.msk [vmem:[%s13] sm:$0xff] %vm791, %v789
    %793 = vst.msk [vmem:[%s13 + $0x8] sm:$0xff] %vm791, %v790
    // Predicated region
    $region70: #{action_conditioned_ff.1} parent=1 // pred_check
      _
    $region71: #{action_conditioned_ff.1} parent=1 // pred_check_branch
      %795 = sbr.rel (0) target = $region73
    $region72: #{action_conditioned_ff.1} parent=1 // pred_region
      _
    $region73: #{action_conditioned_ff.1} parent=1 // pred_fallthru
      _
    // Predicated region
    $region74: #{action_conditioned_ff.1} parent=1 // pred_check
      _
    $region75: #{action_conditioned_ff.1} parent=1 // pred_check_branch
      %797 = sbr.rel (0) target = $region77
    $region76: #{action_conditioned_ff.1} parent=1 // pred_region
      _
    $region77: #{action_conditioned_ff.1} parent=1 // pred_fallthru
      _
    %798 = vsyncpa [#allocation4], 1
    %799 = vsyncpa [#allocation6], 1
    %800 = vsyncpa [#allocation9], 1

</llo_original>
